<compile_context>
chip_gen: v7x
topology: tpu7x:2x2x1
jax: 0.10.0
libtpu: 0.0.40
codegen_flags: <defaults>
</compile_context>

<pallas_src>
import numpy as np
import jax
import jax.numpy as jnp
from jax import lax
from jax.experimental import pallas as pl
from jax.experimental.pallas import tpu as pltpu

S = 8                       # sequence length
H = 32                      # hidden size
V = 128                     # vocab size (== lane width)
MASK_TOKEN_ID = V - 1
INV_SQRT_H = float(1.0 / np.sqrt(H))
INV_S = float(1.0 / S)

# --- activation-slab row layout (per sequence, [A_ROWS, 128] f32) ------------
A_X = 0          # rows  0:16, lanes 0:H -> [x_emb(0..S-1); mask_emb; zeros]
A_OH = 16        # rows 16:24, lanes 0:V -> mask-gated one-hot of input_ids
A_BIAS = 24      # row  24,    lanes 0:S -> additive key bias (0 / -1e30)
A_ROWS = 32

# --- weight-slab row layout (shared, [W_ROWS, 128] f32) ----------------------
W_WV = 0         # rows  0:32, lanes 0:H -> Wv
W_W1 = 32        # rows 32:64, lanes 0:H -> W1
W_W2 = 64        # rows 64:96, lanes 0:V -> W2
W_B2 = 96        # row  96,    lanes 0:V -> b2
W_U = 97         # row  97,    lanes 0:H -> u  = (mask_emb @ Wq) @ Wk^T / sqrt(H)
W_C1 = 98        # row  98,    lanes 0:H -> c1 = mask_emb @ W1 + b1
W_ROWS = 104


def seqprob_kernel(act_ref, w_ref, out_ref):
    """One grid step = one sequence; all S masked-LM passes vectorized."""
    act = act_ref[...]                                   # [A_ROWS, 128]
    w = w_ref[...]                                       # [W_ROWS, 128]

    x16 = act[A_X:A_X + 16, 0:H]                         # [16,H] rows 0..S-1 tokens, S=[MASK]
    wv = w[W_WV:W_WV + H, 0:H]                           # [H,H]
    w1 = w[W_W1:W_W1 + H, 0:H]                           # [H,H]
    w2 = w[W_W2:W_W2 + H, :]                             # [H,V]
    b2 = w[W_B2:W_B2 + 1, :]                             # [1,V]
    u = w[W_U:W_U + 1, 0:H]                              # [1,H]
    c1 = w[W_C1:W_C1 + 1, 0:H]                           # [1,H]

    # Values for every token and for the [MASK] token in one lane-aligned pass.
    v16 = jnp.dot(x16, wv, preferred_element_type=jnp.float32)        # [16,H]
    v_base = v16[0:S, :]                                               # [S,H]
    v_mask = v16[S:S + 1, :]                                           # [1,H]

    # Pre-scaled scores of the shared [MASK] query against every key
    # (row S of x16 is the mask embedding -> lane S is the mask-key score).
    all_s = lax.dot_general(u, x16, (((1,), (1,)), ((), ())),
                            preferred_element_type=jnp.float32)        # [1,16]
    base = all_s[:, 0:S]                                               # [1,S]
    s_mask = all_s[:, S:S + 1]                                         # [1,1]

    # Row `pos` of the score matrix = base scores with the diagonal swapped to
    # the mask-key score (that pass holds [MASK] at position pos); key masking
    # is a precomputed additive bias row (0 / -1e30).
    eye = (lax.broadcasted_iota(jnp.int32, (S, S), 0) ==
           lax.broadcasted_iota(jnp.int32, (S, S), 1))
    kbias = act[A_BIAS:A_BIAS + 1, 0:S]                                # [1,S]
    scores = jnp.where(eye, s_mask, base) + kbias                      # [S,S]

    m = jnp.max(scores, axis=-1, keepdims=True)
    e = jnp.exp(scores - m)
    p = e * pl.reciprocal(jnp.sum(e, axis=-1, keepdims=True), approx=True)

    # ctx = P @ V_base, corrected on the diagonal for the masked value row.
    p_diag = jnp.sum(jnp.where(eye, p, 0.0), axis=-1, keepdims=True)   # [S,1]
    ctx = jnp.dot(p, v_base, preferred_element_type=jnp.float32)
    ctx = ctx + p_diag * (v_mask - v_base)                             # [S,H]

    # MLM head at the masked position of every pass; the residual term
    # mask_emb @ W1 + b1 is the precomputed c1 row.
    h = jnp.tanh(jnp.dot(ctx, w1, preferred_element_type=jnp.float32) + c1)
    logits = jnp.dot(h, w2, preferred_element_type=jnp.float32) + b2   # [S,V]

    lm = jnp.max(logits, axis=-1, keepdims=True)
    le = jnp.exp(logits - lm)
    probs = le * pl.reciprocal(jnp.sum(le, axis=-1, keepdims=True), approx=True)

    # Pick the original token per pass; the one-hot is pre-gated by the
    # attention mask so skipped positions contribute exactly 0.
    onehot_g = act[A_OH:A_OH + S, :]                                   # [S,V]
    total = jnp.sum(probs * onehot_g)
    out_ref[...] = jnp.full((1, 1, V), total * INV_S, jnp.float32)


def _build_act_slabs(input_ids, attention_mask, params):
    """Per-sequence lane-dense activation slabs, stacked along rows."""
    B = input_ids.shape[0]
    emb = params["emb"]
    x_emb = emb[input_ids]                                             # [B,S,H]
    mask_emb = jnp.broadcast_to(emb[MASK_TOKEN_ID][None, None, :], (B, 1, H))
    xcat = jnp.concatenate([x_emb, mask_emb], axis=1)                  # [B,S+1,H]
    xcat = jnp.pad(xcat, ((0, 0), (0, 16 - (S + 1)), (0, 128 - H)))    # [B,16,128]

    am = attention_mask.astype(jnp.float32)                            # [B,S]
    onehot_g = jax.nn.one_hot(input_ids, V, dtype=jnp.float32) * am[..., None]

    kbias = jnp.where(am > 0.0, 0.0, -1e30).astype(jnp.float32)        # [B,S]
    kbias = jnp.pad(kbias[:, None, :], ((0, 0), (0, 0), (0, 128 - S)))  # [B,1,128]

    pad = jnp.zeros((B, A_ROWS - (A_BIAS + 1), 128), jnp.float32)
    act = jnp.concatenate([xcat, onehot_g, kbias, pad], axis=1)        # [B,A_ROWS,128]
    return act.reshape(B * A_ROWS, 128)


def _build_weight_slab(params):
    """Shared weight slab: Wv | W1 | W2 | b2 | u | c1 (q.K folded into u)."""
    emb = params["emb"]
    mask_emb = emb[MASK_TOKEN_ID][None, :]                             # [1,H]
    u = (mask_emb @ params["wq"]) @ params["wk"].T * INV_SQRT_H        # [1,H]
    c1 = mask_emb @ params["w1"] + params["b1"]                        # [1,H]

    def lanes128(a):
        return jnp.pad(a, ((0, 0), (0, 128 - a.shape[1])))

    rows = [lanes128(params["wv"]),                                    # rows  0:32
            lanes128(params["w1"]),                                    # rows 32:64
            params["w2"],                                              # rows 64:96
            params["b2"],                                              # row  96
            lanes128(u),                                               # row  97
            lanes128(c1),                                              # row  98
            jnp.zeros((W_ROWS - 99, 128), jnp.float32)]                # pad
    return jnp.concatenate(rows, axis=0)                               # [W_ROWS,128]


@jax.jit
def masked_lm_scores(input_ids, attention_mask, params):
    """Batched attribution scores: input_ids/attention_mask [B,S] -> [B]."""
    B = input_ids.shape[0]
    act = _build_act_slabs(input_ids, attention_mask, params)
    wslab = _build_weight_slab(params)

    grid_spec = pltpu.PrefetchScalarGridSpec(
        num_scalar_prefetch=0,
        grid=(B,),
        in_specs=[
            pl.BlockSpec((A_ROWS, 128), lambda b: (b, 0)),   # per-sequence slab
            pl.BlockSpec((W_ROWS, 128), lambda b: (0, 0)),   # shared weights (held)
        ],
        out_specs=pl.BlockSpec((1, 1, V), lambda b: (b, 0, 0)),
    )
    out = pl.pallas_call(
        seqprob_kernel,
        out_shape=jax.ShapeDtypeStruct((B, 1, V), jnp.float32),
        grid_spec=grid_spec,
        compiler_params=pltpu.CompilerParams(
            dimension_semantics=("parallel",)),
    )(act, wslab)
    return out[:, 0, 0]


def sequence_probability(input_ids, attention_mask, params):
    """Matches the torch module's forward: [1,S] inputs -> shape (1,) output."""
    return masked_lm_scores(input_ids, attention_mask, params).reshape(1)


def reference(input_ids, attention_mask, params):
    """Pure-numpy re-implementation of the PyTorch forward (synthetic model)."""
    emb = params["emb"]; wq = params["wq"]; wk = params["wk"]; wv = params["wv"]
    w1 = params["w1"]; b1 = params["b1"]; w2 = params["w2"]; b2 = params["b2"]
    ids = np.asarray(input_ids[0])
    am = np.asarray(attention_mask[0]).astype(np.float32)
    total = 0.0
    for pos in range(S):
        if am[pos] == 0:
            continue
        orig = int(ids[pos])
        mids = ids.copy(); mids[pos] = MASK_TOKEN_ID
        x = emb[mids]
        q = x @ wq; k = x @ wk; v = x @ wv
        sc = (q @ k.T) / np.sqrt(np.float32(H))
        sc = np.where(am[None, :] > 0.0, sc, -1e30)
        sc = sc - sc.max(-1, keepdims=True)
        p = np.exp(sc); p = p / p.sum(-1, keepdims=True)
        ctx = p @ v
        h = np.tanh((x + ctx) @ w1 + b1)
        logits = h @ w2 + b2
        lg = logits[pos] - logits[pos].max()
        pr = np.exp(lg); pr = pr / pr.sum()
        total += pr[orig]
    return np.array([total / S], dtype=np.float32)


if __name__ == "__main__":
    key = jax.random.PRNGKey(0)
    ks = jax.random.split(key, 10)
    scale = 1.0 / np.sqrt(H)
    params = {
        "emb": jax.random.normal(ks[0], (V, H), jnp.float32) * 0.5,
        "wq":  jax.random.normal(ks[1], (H, H), jnp.float32) * scale,
        "wk":  jax.random.normal(ks[2], (H, H), jnp.float32) * scale,
        "wv":  jax.random.normal(ks[3], (H, H), jnp.float32) * scale,
        "w1":  jax.random.normal(ks[4], (H, H), jnp.float32) * scale,
        "b1":  jax.random.normal(ks[5], (1, H), jnp.float32) * 0.1,
        "w2":  jax.random.normal(ks[6], (H, V), jnp.float32) * scale,
        "b2":  jax.random.normal(ks[7], (1, V), jnp.float32) * 0.1,
    }
    B = 4
    input_ids = jax.random.randint(ks[8], (B, S), 0, V - 1, dtype=jnp.int32)
    attention_mask = jnp.array([
        [1, 1, 1, 1, 1, 1, 1, 1],
        [1, 1, 1, 1, 1, 1, 0, 0],
        [1, 1, 1, 1, 0, 0, 0, 0],
        [1, 1, 1, 1, 1, 1, 1, 0],
    ], dtype=jnp.int32)

    scores = jax.block_until_ready(
        masked_lm_scores(input_ids, attention_mask, params))

    np_params = jax.tree_util.tree_map(np.asarray, params)
    refs = np.array([
        reference(np.asarray(input_ids[b:b + 1]),
                  np.asarray(attention_mask[b:b + 1]), np_params)[0]
        for b in range(B)], dtype=np.float32)

    assert scores.shape == (B,), scores.shape
    # approx reciprocal (EUP) + EUP exp/tanh vs numpy -> ~1e-4-level relative.
    np.testing.assert_allclose(np.asarray(scores), refs, rtol=1e-3, atol=1e-5)

    one = jax.block_until_ready(
        sequence_probability(input_ids[:1], attention_mask[:1], params))
    assert one.shape == (1,), one.shape
    np.testing.assert_allclose(np.asarray(one), refs[:1], rtol=1e-3, atol=1e-5)
    print("KERNEL_OK")
</pallas_src>

<mosaic_0001>
module attributes {stable_mosaic.version = 11 : i64} {
  func.func @seqprob_kernel(%arg0: i32, %arg1: memref<32x128xf32, #tpu.memory_space<vmem>>, %arg2: memref<104x128xf32, #tpu.memory_space<vmem>>, %arg3: memref<1x1x128xf32, #tpu.memory_space<vmem>>) attributes {dimension_semantics = [#tpu.dimension_semantics<parallel>], iteration_bounds = array<i64: 4>, scalar_prefetch = 0 : i64, scratch_operands = 0 : i64, tpu.core_type = #tpu.core_type<tc>, window_params = [{transform_indices = @transform_0, window_bounds = array<i64: 32, 128>}, {pipeline_mode = #tpu.pipeline_mode<synchronous>, transform_indices = @transform_1, window_bounds = array<i64: 104, 128>}, {transform_indices = @transform_2, window_bounds = array<i64: 1, 1, 128>}]} {
    %c0 = arith.constant 0 : index
    %c0_0 = arith.constant 0 : index
    %0 = vector.load %arg1[%c0, %c0_0] : memref<32x128xf32, #tpu.memory_space<vmem>>, vector<32x128xf32>
    %c0_1 = arith.constant 0 : index
    %c0_2 = arith.constant 0 : index
    %1 = vector.load %arg2[%c0_1, %c0_2] : memref<104x128xf32, #tpu.memory_space<vmem>>, vector<104x128xf32>
    %2 = vector.extract_strided_slice %0 {offsets = [0, 0], sizes = [16, 32], strides = [1, 1]} : vector<32x128xf32> to vector<16x32xf32>
    %3 = vector.extract_strided_slice %1 {offsets = [0, 0], sizes = [32, 32], strides = [1, 1]} : vector<104x128xf32> to vector<32x32xf32>
    %4 = vector.extract_strided_slice %1 {offsets = [32, 0], sizes = [32, 32], strides = [1, 1]} : vector<104x128xf32> to vector<32x32xf32>
    %5 = vector.extract_strided_slice %1 {offsets = [64, 0], sizes = [32, 128], strides = [1, 1]} : vector<104x128xf32> to vector<32x128xf32>
    %6 = vector.extract_strided_slice %1 {offsets = [96, 0], sizes = [1, 128], strides = [1, 1]} : vector<104x128xf32> to vector<1x128xf32>
    %7 = vector.extract_strided_slice %1 {offsets = [97, 0], sizes = [1, 32], strides = [1, 1]} : vector<104x128xf32> to vector<1x32xf32>
    %8 = vector.extract_strided_slice %1 {offsets = [98, 0], sizes = [1, 32], strides = [1, 1]} : vector<104x128xf32> to vector<1x32xf32>
    %cst = arith.constant dense<0.000000e+00> : vector<16x32xf32>
    %9 = tpu.matmul %2, %3, %cst {dimension_numbers = #tpu.dot_dimension_numbers<[1], [0], [0], [1], [0, 0, 1, 1], [], []>} : vector<16x32xf32>, vector<32x32xf32>, vector<16x32xf32> -> vector<16x32xf32>
    %10 = vector.extract_strided_slice %9 {offsets = [0, 0], sizes = [8, 32], strides = [1, 1]} : vector<16x32xf32> to vector<8x32xf32>
    %11 = vector.extract_strided_slice %9 {offsets = [8, 0], sizes = [1, 32], strides = [1, 1]} : vector<16x32xf32> to vector<1x32xf32>
    %cst_3 = arith.constant dense<0.000000e+00> : vector<1x16xf32>
    %12 = tpu.matmul %7, %2, %cst_3 {dimension_numbers = #tpu.dot_dimension_numbers<[1], [1], [0], [0], [0, 0, 1, 0], [], []>} : vector<1x32xf32>, vector<16x32xf32>, vector<1x16xf32> -> vector<1x16xf32>
    %13 = vector.extract_strided_slice %12 {offsets = [0, 0], sizes = [1, 8], strides = [1, 1]} : vector<1x16xf32> to vector<1x8xf32>
    %14 = vector.extract_strided_slice %12 {offsets = [0, 8], sizes = [1, 1], strides = [1, 1]} : vector<1x16xf32> to vector<1x1xf32>
    %15 = tpu.iota {dimensions = array<i32: 0>} : vector<8x8xi32>
    %16 = tpu.iota {dimensions = array<i32: 1>} : vector<8x8xi32>
    %17 = arith.cmpi eq, %15, %16 : vector<8x8xi32>
    %18 = vector.extract_strided_slice %0 {offsets = [24, 0], sizes = [1, 8], strides = [1, 1]} : vector<32x128xf32> to vector<1x8xf32>
    %19 = vector.shape_cast %14 : vector<1x1xf32> to vector<1x1xf32>
    %20 = vector.broadcast %19 : vector<1x1xf32> to vector<8x8xf32>
    %21 = vector.shape_cast %13 : vector<1x8xf32> to vector<1x8xf32>
    %22 = vector.broadcast %21 : vector<1x8xf32> to vector<8x8xf32>
    %23 = arith.select %17, %20, %22 : vector<8x8xi1>, vector<8x8xf32>
    %24 = vector.broadcast %18 : vector<1x8xf32> to vector<8x8xf32>
    %25 = arith.addf %23, %24 : vector<8x8xf32>
    %cst_4 = arith.constant dense<0xFF800000> : vector<8xf32>
    %26 = vector.multi_reduction <maximumf>, %25, %cst_4 [1] : vector<8x8xf32> to vector<8xf32>
    %27 = vector.shape_cast %26 : vector<8xf32> to vector<8x1xf32>
    %28 = vector.broadcast %27 : vector<8x1xf32> to vector<8x8xf32>
    %29 = arith.subf %25, %28 : vector<8x8xf32>
    %30 = math.exp %29 : vector<8x8xf32>
    %cst_5 = arith.constant dense<0.000000e+00> : vector<8xf32>
    %31 = vector.multi_reduction <add>, %30, %cst_5 [1] : vector<8x8xf32> to vector<8xf32>
    %32 = vector.shape_cast %31 : vector<8xf32> to vector<8x1xf32>
    %33 = tpu.reciprocal %32 {approx = true} : vector<8x1xf32> -> vector<8x1xf32>
    %34 = vector.broadcast %33 : vector<8x1xf32> to vector<8x8xf32>
    %35 = arith.mulf %30, %34 : vector<8x8xf32>
    %cst_6 = arith.constant 0.000000e+00 : f32
    %36 = vector.broadcast %cst_6 : f32 to vector<8x8xf32>
    %37 = arith.select %17, %35, %36 : vector<8x8xi1>, vector<8x8xf32>
    %cst_7 = arith.constant dense<0.000000e+00> : vector<8xf32>
    %38 = vector.multi_reduction <add>, %37, %cst_7 [1] : vector<8x8xf32> to vector<8xf32>
    %39 = vector.shape_cast %38 : vector<8xf32> to vector<8x1xf32>
    %cst_8 = arith.constant dense<0.000000e+00> : vector<8x32xf32>
    %40 = tpu.matmul %35, %10, %cst_8 {dimension_numbers = #tpu.dot_dimension_numbers<[1], [0], [0], [1], [0, 0, 1, 1], [], []>} : vector<8x8xf32>, vector<8x32xf32>, vector<8x32xf32> -> vector<8x32xf32>
    %41 = vector.broadcast %11 : vector<1x32xf32> to vector<8x32xf32>
    %42 = arith.subf %41, %10 : vector<8x32xf32>
    %43 = vector.broadcast %39 : vector<8x1xf32> to vector<8x32xf32>
    %44 = arith.mulf %43, %42 : vector<8x32xf32>
    %45 = arith.addf %40, %44 : vector<8x32xf32>
    %cst_9 = arith.constant dense<0.000000e+00> : vector<8x32xf32>
    %46 = tpu.matmul %45, %4, %cst_9 {dimension_numbers = #tpu.dot_dimension_numbers<[1], [0], [0], [1], [0, 0, 1, 1], [], []>} : vector<8x32xf32>, vector<32x32xf32>, vector<8x32xf32> -> vector<8x32xf32>
    %47 = vector.broadcast %8 : vector<1x32xf32> to vector<8x32xf32>
    %48 = arith.addf %46, %47 : vector<8x32xf32>
    %49 = math.tanh %48 : vector<8x32xf32>
    %cst_10 = arith.constant dense<0.000000e+00> : vector<8x128xf32>
    %50 = tpu.matmul %49, %5, %cst_10 {dimension_numbers = #tpu.dot_dimension_numbers<[1], [0], [0], [1], [0, 0, 1, 1], [], []>} : vector<8x32xf32>, vector<32x128xf32>, vector<8x128xf32> -> vector<8x128xf32>
    %51 = vector.broadcast %6 : vector<1x128xf32> to vector<8x128xf32>
    %52 = arith.addf %50, %51 : vector<8x128xf32>
    %cst_11 = arith.constant dense<0xFF800000> : vector<8xf32>
    %53 = vector.multi_reduction <maximumf>, %52, %cst_11 [1] : vector<8x128xf32> to vector<8xf32>
    %54 = vector.shape_cast %53 : vector<8xf32> to vector<8x1xf32>
    %55 = vector.broadcast %54 : vector<8x1xf32> to vector<8x128xf32>
    %56 = arith.subf %52, %55 : vector<8x128xf32>
    %57 = math.exp %56 : vector<8x128xf32>
    %cst_12 = arith.constant dense<0.000000e+00> : vector<8xf32>
    %58 = vector.multi_reduction <add>, %57, %cst_12 [1] : vector<8x128xf32> to vector<8xf32>
    %59 = vector.shape_cast %58 : vector<8xf32> to vector<8x1xf32>
    %60 = tpu.reciprocal %59 {approx = true} : vector<8x1xf32> -> vector<8x1xf32>
    %61 = vector.broadcast %60 : vector<8x1xf32> to vector<8x128xf32>
    %62 = arith.mulf %57, %61 : vector<8x128xf32>
    %63 = vector.extract_strided_slice %0 {offsets = [16, 0], sizes = [8, 128], strides = [1, 1]} : vector<32x128xf32> to vector<8x128xf32>
    %64 = arith.mulf %62, %63 : vector<8x128xf32>
    %65 = vector.shape_cast %64 : vector<8x128xf32> to vector<1x8x128xf32>
    %cst_13 = arith.constant dense<0.000000e+00> : vector<1xf32>
    %66 = vector.multi_reduction <add>, %65, %cst_13 [1, 2] : vector<1x8x128xf32> to vector<1xf32>
    %67 = vector.shape_cast %66 : vector<1xf32> to vector<1x1x1xf32>
    %68 = vector.extract %67[0, 0, 0] : f32 from vector<1x1x1xf32>
    %cst_14 = arith.constant 1.250000e-01 : f32
    %69 = arith.mulf %68, %cst_14 : f32
    %70 = vector.broadcast %69 : f32 to vector<1x1x128xf32>
    %c0_15 = arith.constant 0 : index
    %c0_16 = arith.constant 0 : index
    %c0_17 = arith.constant 0 : index
    %71 = vector.load %arg3[%c0_15, %c0_16, %c0_17] : memref<1x1x128xf32, #tpu.memory_space<vmem>>, vector<1x1x128xf32>
    tpu.vector_store %arg3[%c0_15, %c0_16, %c0_17], %70 {strides = array<i32>} : memref<1x1x128xf32, #tpu.memory_space<vmem>>, vector<1x1x128xf32>,
    return
  }
  func.func @transform_0(%arg0: i32) -> (i32, i32) {
    %c0_i32 = arith.constant 0 : i32
    %c0_i32_0 = arith.constant 0 : i32
    return %arg0, %c0_i32 : i32, i32
  }
  func.func @transform_1(%arg0: i32) -> (i32, i32) {
    %c0_i32 = arith.constant 0 : i32
    %c0_i32_0 = arith.constant 0 : i32
    %c0_i32_1 = arith.constant 0 : i32
    return %c0_i32, %c0_i32_0 : i32, i32
  }
  func.func @transform_2(%arg0: i32) -> (i32, i32, i32) {
    %c0_i32 = arith.constant 0 : i32
    %c0_i32_0 = arith.constant 0 : i32
    %c0_i32_1 = arith.constant 0 : i32
    return %arg0, %c0_i32, %c0_i32_0 : i32, i32, i32
  }
}

</mosaic_0001>

<llo_original>
// kernel: masked_lm_scores.1
$region0: #{masked_lm_scores.1}
  #allocation0 [shape = 'u32[]', space=smem, size = 0x4, offset = 0x4, fixed_abs, tag = 'smem constant byte address 0x4 - core index']
  #allocation1 [shape = 'u32[144,128]{1,0:T(1,128)}', space=vmem, size = 0x12000, scoped, tag = 'internal scratch']
  %s0 = inlined_call_operand.vmem [shape: f32[128,128], index: 0, kind: input, shape index: {}]
  %s1 = inlined_call_operand.vmem [shape: f32[104,128], index: 1, kind: input, shape index: {}]
  %s2 = inlined_call_operand.vmem [shape: f32[4,1,128], index: 2, kind: output, shape index: {}]
  %s3 = sld [smem:[#allocation0]]
  $region41: #{masked_lm_scores.1} parent=0
    _
  %s5 = ssub.s32 1, %s3
  %s6 = scalar_select 0, %s5, %s3
  loop: start=0, step=1, limit=6
  $region2: #{masked_lm_scores.1} parent=0 // loop_pre_header
    _
  $region3: #{masked_lm_scores.1} parent=0 // loop_header
    %s8 = sphi 0, %s12
    %p9 = scmp.ge.s32.totalorder %s8, 6
    %s18 = sphi 0, %s20
    %s21 = sphi 0, %s18
    %s22 = sphi 0, %s21
    %s38 = sphi 0, %s22
    %s42 = sphi 0, %s42
    %s44 = sphi 0, %s42
    %s45 = sphi 0, %s44
    %s59 = sphi 0, %s45
    %s65 = sphi 0, %s67
    %s68 = sphi 0, %s65
    %s69 = sphi 0, %s68
    %s85 = sphi 0, %s69
  $region4: #{masked_lm_scores.1} parent=0 // loop_header_branch
    %11 = sbr.rel (%p9) target = $region8
  $region5: #{masked_lm_scores.1} parent=0 // loop_body
    %s13 = ssub.s32 %s8, 1
    %s14 = ssub.s32 %s8, 2
    %s15 = sadd.s32 %s8, 1
    %s16 = ssub.s32 %s8, %s15
    %p17 = scmp.eq.s32.totalorder %s16, 0
    %s19 = sadd.s32 %s18, 1
    %s20 = scalar_select %p17, %s18, %s19
    %p23 = pneg %p17
    %p24 = scmp.eq.s32.totalorder %s8, 3
    %p25 = por %p23, %p24
    %p26 = scmp.ne.s32.totalorder %s18, %s21
    %p27 = scmp.eq.s32.totalorder %s8, 0
    %p28 = por %p26, %p27
    %p29 = scmp.ne.s32.totalorder %s18, %s21
    %p30 = scmp.eq.s32.totalorder %s13, 3
    %p31 = por %p29, %p30
    %p32 = scmp.ne.s32.totalorder %s21, %s22
    %p33 = scmp.eq.s32.totalorder %s13, 0
    %p34 = por %p32, %p33
    %p35 = scmp.ne.s32.totalorder %s21, %s22
    %p36 = scmp.eq.s32.totalorder %s14, 3
    %p37 = por %p35, %p36
    %p39 = scmp.ne.s32.totalorder %s22, %s38
    %p40 = scmp.eq.s32.totalorder %s14, 0
    %p41 = por %p39, %p40
    %s43 = sadd.s32 %s42, 1
    %p46 = scmp.eq.s32.totalorder %s8, 3
    %p47 = scmp.ne.s32.totalorder %s42, %s44
    %p48 = scmp.eq.s32.totalorder %s8, 0
    %p49 = por %p47, %p48
    %p50 = scmp.ne.s32.totalorder %s42, %s44
    %p51 = scmp.eq.s32.totalorder %s13, 3
    %p52 = por %p50, %p51
    %p53 = scmp.ne.s32.totalorder %s44, %s45
    %p54 = scmp.eq.s32.totalorder %s13, 0
    %p55 = por %p53, %p54
    %p56 = scmp.ne.s32.totalorder %s44, %s45
    %p57 = scmp.eq.s32.totalorder %s14, 3
    %p58 = por %p56, %p57
    %p60 = scmp.ne.s32.totalorder %s45, %s59
    %p61 = scmp.eq.s32.totalorder %s14, 0
    %p62 = por %p60, %p61
    %s63 = ssub.s32 %s8, %s15
    %p64 = scmp.eq.s32.totalorder %s63, 0
    %s66 = sadd.s32 %s65, 1
    %s67 = scalar_select %p64, %s65, %s66
    %p70 = pneg %p64
    %p71 = scmp.eq.s32.totalorder %s8, 3
    %p72 = por %p70, %p71
    %p73 = scmp.ne.s32.totalorder %s65, %s68
    %p74 = scmp.eq.s32.totalorder %s8, 0
    %p75 = por %p73, %p74
    %p76 = scmp.ne.s32.totalorder %s65, %s68
    %p77 = scmp.eq.s32.totalorder %s13, 3
    %p78 = por %p76, %p77
    %p79 = scmp.ne.s32.totalorder %s68, %s69
    %p80 = scmp.eq.s32.totalorder %s13, 0
    %p81 = por %p79, %p80
    %p82 = scmp.ne.s32.totalorder %s68, %s69
    %p83 = scmp.eq.s32.totalorder %s14, 3
    %p84 = por %p82, %p83
    %p86 = scmp.ne.s32.totalorder %s69, %s85
    %p87 = scmp.eq.s32.totalorder %s14, 0
    %p88 = por %p86, %p87
    %p89 = scmp.le.s32.totalorder 1, %s8
    %p90 = scmp.lt.s32.totalorder %s8, 5
    %p91 = pnand %p89, %p90
    %p92 = pneg %p91
    // Predicated region
    $region9: #{masked_lm_scores.1} parent=5 // pred_check
      _
    $region10: #{masked_lm_scores.1} parent=5 // pred_check_branch
      %94 = sbr.rel (%p91) target = $region12
    $region11: #{masked_lm_scores.1} parent=5 // pred_region
      %s95 = ssub.s32 %s8, 1
      // Predicated region
      $region13: #{masked_lm_scores.1} parent=11 // pred_check
        %p96 = pneg %p55
      $region14: #{masked_lm_scores.1} parent=11 // pred_check_branch
        %98 = sbr.rel (%p96) target = $region16
      $region15: #{masked_lm_scores.1} parent=11 // pred_region
        _
      $region16: #{masked_lm_scores.1} parent=11 // pred_fallthru
        _
    $region12: #{masked_lm_scores.1} parent=5 // pred_fallthru
      _
    %p99 = scmp.lt.s32.totalorder %s8, 4
    // Predicated region
    $region17: #{masked_lm_scores.1} parent=5 // pred_check
      %p100 = pneg %p99
    $region18: #{masked_lm_scores.1} parent=5 // pred_check_branch
      %102 = sbr.rel (%p100) target = $region20
    $region19: #{masked_lm_scores.1} parent=5 // pred_region
      // Predicated region
      $region21: #{masked_lm_scores.1} parent=19 // pred_check
        %p103 = pneg %p28
      $region22: #{masked_lm_scores.1} parent=19 // pred_check_branch
        %105 = sbr.rel (%p103) target = $region24
      $region23: #{masked_lm_scores.1} parent=19 // pred_region
        %s106 = smul.u32 4, %s8
        %p107 = scmp.lt.s32.totalorder %s106, 15
        %s108 = scalar_select %p107, %s106, 15
        %s109 = smul.addr %s108, 8
        %s110 = scalar_lea.vmem %s0, %s109
        %s111 = smul.u32 4, %s8
      $region24: #{masked_lm_scores.1} parent=19 // pred_fallthru
        _
    $region20: #{masked_lm_scores.1} parent=5 // pred_fallthru
      _
    %p112 = scmp.le.s32.totalorder 1, %s8
    %p113 = scmp.lt.s32.totalorder %s8, 5
    %p114 = pnand %p112, %p113
    %p115 = pneg %p114
    // Predicated region
    $region25: #{masked_lm_scores.1} parent=5 // pred_check
      _
    $region26: #{masked_lm_scores.1} parent=5 // pred_check_branch
      %117 = sbr.rel (%p114) target = $region28
    $region27: #{masked_lm_scores.1} parent=5 // pred_region
      %s118 = ssub.s32 %s8, 1
      %s119 = smul.u32 4, %s13
      %p120 = scmp.lt.s32.totalorder %s119, 15
      %s121 = scalar_select %p120, %s119, 15
      %s122 = smul.addr %s121, 8
      %s123 = scalar_lea.vmem %s0, %s122
      %p124 = pneg %p34
      %p125 = pneg %p31
      %p126 = pneg %p55
      %p127 = pneg %p52
      %p128 = pneg %p81
      %p129 = pneg %p78
      %p130 = scmp.lt.s32.totalorder %s13, 3
      %s131 = scalar_select %p130, %s13, 3
      %s132 = scalar_lea.vmem %s2, %s131
      %s133 = smul.u32 4, %s13
      %p134 = scmp.lt.s32.totalorder %s133, 15
      %s135 = scalar_select %p134, %s133, 15
      %s136 = smul.addr %s135, 8
      %s137 = scalar_lea.vmem %s0, %s136
      %s138 = smul.u32 4, %s13
      %p139 = scmp.lt.s32.totalorder %s13, 3
      %s140 = scalar_select %p139, %s13, 3
      %s141 = scalar_lea.vmem %s2, %s140
      %v142 = vld [vmem:[%s137] sm:$0xff]
      %v143 = vld [vmem:[%s137 + $0x8] sm:$0xff]
      %v144 = vld [vmem:[%s137 + $0x10] sm:$0xff]
      %v145 = vld [vmem:[%s137 + $0x18] sm:$0xff]
      %v146 = vld [vmem:[%s1] sm:$0xff]
      %v147 = vld [vmem:[%s1 + $0x8] sm:$0xff]
      %v148 = vld [vmem:[%s1 + $0x10] sm:$0xff]
      %v149 = vld [vmem:[%s1 + $0x18] sm:$0xff]
      %v150 = vld [vmem:[%s1 + $0x20] sm:$0xff]
      %v151 = vld [vmem:[%s1 + $0x28] sm:$0xff]
      %v152 = vld [vmem:[%s1 + $0x30] sm:$0xff]
      %v153 = vld [vmem:[%s1 + $0x38] sm:$0xff]
      %v154 = vld [vmem:[%s1 + $0x40] sm:$0xff]
      %v155 = vld [vmem:[%s1 + $0x48] sm:$0xff]
      %v156 = vld [vmem:[%s1 + $0x50] sm:$0xff]
      %v157 = vld [vmem:[%s1 + $0x58] sm:$0xff]
      %v158 = vld [vmem:[%s1 + $0x60] sm:$0xff]
      %vm159 = vcmask 261120
      %v161 = vsel %vm159, %v142, 0
      %v164 = vsel %vm159, %v143, 0
      %166 = vmatprep.subr.mxu0 0.0
      %167 = vmatpush1.msra.mxu0 %v146
      %168 = vmatprep.subr.mxu0 0.0
      %169 = vmatpush1.msra.mxu0 %v147
      %170 = vmatprep.subr.mxu0 0.0
      %171 = vmatpush1.msra.mxu0 %v148
      %172 = vmatprep.subr.mxu0 0.0
      %173 = vmatpush1.msra.mxu0 %v149
      %174 = vmatprep.subr.mxu0 0.0
      %175 = vmatpush1.msra.mxu0 0.0
      %176 = vmatprep.subr.mxu0 0.0
      %177 = vmatpush1.msra.mxu0 0.0
      %178 = vmatprep.subr.mxu0 0.0
      %179 = vmatpush1.msra.mxu0 0.0
      %180 = vmatprep.subr.mxu0 0.0
      %181 = vmatpush1.msra.mxu0 0.0
      %182 = vmatprep.subr.mxu0 0.0
      %183 = vmatpush1.msra.mxu0 0.0
      %184 = vmatprep.subr.mxu0 0.0
      %185 = vmatpush1.msra.mxu0 0.0
      %186 = vmatprep.subr.mxu0 0.0
      %187 = vmatpush1.msra.mxu0 0.0
      %188 = vmatprep.subr.mxu0 0.0
      %189 = vmatpush1.msra.mxu0 0.0
      %190 = vmatprep.subr.mxu0 0.0
      %191 = vmatpush1.msra.mxu0 0.0
      %192 = vmatprep.subr.mxu0 0.0
      %193 = vmatpush1.msra.mxu0 0.0
      %194 = vmatprep.subr.mxu0 0.0
      %195 = vmatpush1.msra.mxu0 0.0
      %196 = vmatprep.subr.mxu0 0.0
      %197 = vmatpush1.msra.mxu0 0.0
      %198 = vmatprep.subr.mxu0 0.0
      %199 = vmatpush1.msra.mxu0 0.0
      %200 = vmatprep.subr.mxu0 0.0
      %201 = vmatpush1.msra.mxu0 0.0
      %202 = vmatprep.subr.mxu0 0.0
      %203 = vmatpush1.msra.mxu0 0.0
      %204 = vmatprep.subr.mxu0 0.0
      %205 = vmatpush1.msra.mxu0 0.0
      %206 = vmatprep.subr.mxu0 0.0
      %207 = vmatpush1.msra.mxu0 0.0
      %208 = vmatprep.subr.mxu0 0.0
      %209 = vmatpush1.msra.mxu0 0.0
      %210 = vmatprep.subr.mxu0 0.0
      %211 = vmatpush1.msra.mxu0 0.0
      %212 = vmatprep.subr.mxu0 0.0
      %213 = vmatpush1.msra.mxu0 0.0
      %214 = vmatprep.subr.mxu0 0.0
      %215 = vmatpush1.msra.mxu0 0.0
      %216 = vmatprep.subr.mxu0 0.0
      %217 = vmatpush1.msra.mxu0 0.0
      %218 = vmatprep.subr.mxu0 0.0
      %219 = vmatpush1.msra.mxu0 0.0
      %220 = vmatprep.subr.mxu0 0.0
      %221 = vmatpush1.msra.mxu0 0.0
      %222 = vmatprep.subr.mxu0 0.0
      %223 = vmatpush1.msra.mxu0 0.0
      %224 = vmatprep.subr.mxu0 0.0
      %225 = vmatpush1.msra.mxu0 0.0
      %226 = vmatprep.subr.mxu0 0.0
      %227 = vmatpush1.msra.mxu0 0.0
      %228 = vmatprep.subr.mxu0 0.0
      %229 = vmatpush1.msra.mxu0 0.0
      %230 = vmatprep.mubr.f32.mxu0 0.0
      %231 = vmatmul.mubr.f32.gmra.mrb[0].mxu0 %v161
      %v232 = vpop.f32.mrb[0].mxu0
      %v233 = vadd.f32 0.0, %v232
      %v234 = vpop.f32.mrb[0].mxu0
      %235 = vmatprep.mubr.f32.mxu0 0.0
      %236 = vmatmul.mubr.f32.gmra.mrb[0].mxu0 %v164
      %v237 = vpop.f32.mrb[0].mxu0
      %v238 = vadd.f32 0.0, %v237
      %v239 = vpop.f32.mrb[0].mxu0
      %240 = vdwg.mxu0
      %v242 = vrot.slane %v158, 1
      %v243 = vsel %vm159, %v242, 0
      %245 = vmatprep.subr.mxu0 0.0
      %246 = vmatpush1.xpose.msra.mxu0 %v161
      %247 = vmatprep.subr.mxu0 0.0
      %248 = vmatpush1.xpose.msra.mxu0 %v164
      %249 = vmatprep.subr.mxu0 0.0
      %250 = vmatpush1.xpose.msra.mxu0 0.0
      %251 = vmatprep.subr.mxu0 0.0
      %252 = vmatpush1.xpose.msra.mxu0 0.0
      %253 = vmatprep.subr.mxu0 0.0
      %254 = vmatpush1.xpose.msra.mxu0 0.0
      %255 = vmatprep.subr.mxu0 0.0
      %256 = vmatpush1.xpose.msra.mxu0 0.0
      %257 = vmatprep.subr.mxu0 0.0
      %258 = vmatpush1.xpose.msra.mxu0 0.0
      %259 = vmatprep.subr.mxu0 0.0
      %260 = vmatpush1.xpose.msra.mxu0 0.0
      %261 = vmatprep.subr.mxu0 0.0
      %262 = vmatpush1.xpose.msra.mxu0 0.0
      %263 = vmatprep.subr.mxu0 0.0
      %264 = vmatpush1.xpose.msra.mxu0 0.0
      %265 = vmatprep.subr.mxu0 0.0
      %266 = vmatpush1.xpose.msra.mxu0 0.0
      %267 = vmatprep.subr.mxu0 0.0
      %268 = vmatpush1.xpose.msra.mxu0 0.0
      %269 = vmatprep.subr.mxu0 0.0
      %270 = vmatpush1.xpose.msra.mxu0 0.0
      %271 = vmatprep.subr.mxu0 0.0
      %272 = vmatpush1.xpose.msra.mxu0 0.0
      %273 = vmatprep.subr.mxu0 0.0
      %274 = vmatpush1.xpose.msra.mxu0 0.0
      %275 = vmatprep.subr.mxu0 0.0
      %276 = vmatpush1.xpose.msra.mxu0 0.0
      %277 = vmatprep.subr.mxu0 0.0
      %278 = vmatpush1.xpose.msra.mxu0 0.0
      %279 = vmatprep.subr.mxu0 0.0
      %280 = vmatpush1.xpose.msra.mxu0 0.0
      %281 = vmatprep.subr.mxu0 0.0
      %282 = vmatpush1.xpose.msra.mxu0 0.0
      %283 = vmatprep.subr.mxu0 0.0
      %284 = vmatpush1.xpose.msra.mxu0 0.0
      %285 = vmatprep.subr.mxu0 0.0
      %286 = vmatpush1.xpose.msra.mxu0 0.0
      %287 = vmatprep.subr.mxu0 0.0
      %288 = vmatpush1.xpose.msra.mxu0 0.0
      %289 = vmatprep.subr.mxu0 0.0
      %290 = vmatpush1.xpose.msra.mxu0 0.0
      %291 = vmatprep.subr.mxu0 0.0
      %292 = vmatpush1.xpose.msra.mxu0 0.0
      %293 = vmatprep.subr.mxu0 0.0
      %294 = vmatpush1.xpose.msra.mxu0 0.0
      %295 = vmatprep.subr.mxu0 0.0
      %296 = vmatpush1.xpose.msra.mxu0 0.0
      %297 = vmatprep.subr.mxu0 0.0
      %298 = vmatpush1.xpose.msra.mxu0 0.0
      %299 = vmatprep.subr.mxu0 0.0
      %300 = vmatpush1.xpose.msra.mxu0 0.0
      %301 = vmatprep.subr.mxu0 0.0
      %302 = vmatpush1.xpose.msra.mxu0 0.0
      %303 = vmatprep.subr.mxu0 0.0
      %304 = vmatpush1.xpose.msra.mxu0 0.0
      %305 = vmatprep.subr.mxu0 0.0
      %306 = vmatpush1.xpose.msra.mxu0 0.0
      %307 = vmatprep.subr.mxu0 0.0
      %308 = vmatpush1.xpose.msra.mxu0 0.0
      %309 = vmatprep.mubr.f32.mxu0 0.0
      %310 = vmatmul.mubr.f32.gmra.mrb[0].mxu0 %v243
      %v311 = vpop.f32.mrb[0].mxu0
      %v312 = vadd.f32 0.0, %v311
      %v313 = vpop.f32.mrb[0].mxu0
      %314 = vdwg.mxu0
      %v315 = vlaneseq
      %v316 = vshrl.u32 %v315, 7
      %v317 = vlaneseq
      %v318 = vand.u32 %v317, 127
      %vm319 = vcmp.eq.s32.totalorder %v316, %v318
      %321 = vrot.lane.b32.xlu0 %v312, 120
      %v322 = vpop.permute.xlu0 %321
      %s323 = vtos %v322
      %v324 = vstv %s323
      %v326 = vlaneseq
      %v327 = vshrl.u32 %v326, 7
      %v328 = vsub.s32 0, %v327
      %v329 = vrot.slane %v312, %v328
      %v330 = vsel %vm319, %v324, %v329
      %v331 = vlaneseq
      %v332 = vshrl.u32 %v331, 7
      %v333 = vsub.s32 0, %v332
      %v334 = vrot.slane %v145, %v333
      %v335 = vadd.f32 %v330, %v334
      %vm336 = vcmask 64512
      %v337 = vsel %vm336, %v335, -inf
      %338 = vmax.xlane.f32.xlu0 %v337
      %v339 = vpop.xlane.xlu0 %338
      %v340 = vsub.f32 %v335, %v339
      %v341 = vmul.f32 %v340, 1.442695
      %v342 = vpow.pop %v341
      %v343 = vsel %vm336, %v342, 0.0
      %344 = vadd.xlane.f32.xlu0 %v343
      %v345 = vpop.xlane.xlu0 %344
      %v346 = vrcp.pop %v345
      %v347 = vmul.f32 %v342, %v346
      %v348 = vsel %vm319, %v347, 0.0
      %v349 = vsel %vm336, %v348, 0.0
      %350 = vadd.xlane.f32.xlu0 %v349
      %v351 = vpop.xlane.xlu0 %350
      %v352 = vlaneseq
      %v353 = vshrl.u32 %v352, 7
      %v354 = vsub.s32 0, %v353
      %v355 = vrot.slane %v238, %v354
      %v356 = vsub.f32 %v355, %v233
      %v357 = vmul.f32 %v351, %v356
      %v359 = vsel %vm336, %v347, 0
      %361 = vmatprep.subr.mxu0 0.0
      %362 = vmatpush1.msra.mxu0 %v233
      %363 = vmatprep.subr.mxu0 0.0
      %364 = vmatpush1.msra.mxu0 0.0
      %365 = vmatprep.subr.mxu0 0.0
      %366 = vmatpush1.msra.mxu0 0.0
      %367 = vmatprep.subr.mxu0 0.0
      %368 = vmatpush1.msra.mxu0 0.0
      %369 = vmatprep.subr.mxu0 0.0
      %370 = vmatpush1.msra.mxu0 0.0
      %371 = vmatprep.subr.mxu0 0.0
      %372 = vmatpush1.msra.mxu0 0.0
      %373 = vmatprep.subr.mxu0 0.0
      %374 = vmatpush1.msra.mxu0 0.0
      %375 = vmatprep.subr.mxu0 0.0
      %376 = vmatpush1.msra.mxu0 0.0
      %377 = vmatprep.subr.mxu0 0.0
      %378 = vmatpush1.msra.mxu0 0.0
      %379 = vmatprep.subr.mxu0 0.0
      %380 = vmatpush1.msra.mxu0 0.0
      %381 = vmatprep.subr.mxu0 0.0
      %382 = vmatpush1.msra.mxu0 0.0
      %383 = vmatprep.subr.mxu0 0.0
      %384 = vmatpush1.msra.mxu0 0.0
      %385 = vmatprep.subr.mxu0 0.0
      %386 = vmatpush1.msra.mxu0 0.0
      %387 = vmatprep.subr.mxu0 0.0
      %388 = vmatpush1.msra.mxu0 0.0
      %389 = vmatprep.subr.mxu0 0.0
      %390 = vmatpush1.msra.mxu0 0.0
      %391 = vmatprep.subr.mxu0 0.0
      %392 = vmatpush1.msra.mxu0 0.0
      %393 = vmatprep.subr.mxu0 0.0
      %394 = vmatpush1.msra.mxu0 0.0
      %395 = vmatprep.subr.mxu0 0.0
      %396 = vmatpush1.msra.mxu0 0.0
      %397 = vmatprep.subr.mxu0 0.0
      %398 = vmatpush1.msra.mxu0 0.0
      %399 = vmatprep.subr.mxu0 0.0
      %400 = vmatpush1.msra.mxu0 0.0
      %401 = vmatprep.subr.mxu0 0.0
      %402 = vmatpush1.msra.mxu0 0.0
      %403 = vmatprep.subr.mxu0 0.0
      %404 = vmatpush1.msra.mxu0 0.0
      %405 = vmatprep.subr.mxu0 0.0
      %406 = vmatpush1.msra.mxu0 0.0
      %407 = vmatprep.subr.mxu0 0.0
      %408 = vmatpush1.msra.mxu0 0.0
      %409 = vmatprep.subr.mxu0 0.0
      %410 = vmatpush1.msra.mxu0 0.0
      %411 = vmatprep.subr.mxu0 0.0
      %412 = vmatpush1.msra.mxu0 0.0
      %413 = vmatprep.subr.mxu0 0.0
      %414 = vmatpush1.msra.mxu0 0.0
      %415 = vmatprep.subr.mxu0 0.0
      %416 = vmatpush1.msra.mxu0 0.0
      %417 = vmatprep.subr.mxu0 0.0
      %418 = vmatpush1.msra.mxu0 0.0
      %419 = vmatprep.subr.mxu0 0.0
      %420 = vmatpush1.msra.mxu0 0.0
      %421 = vmatprep.subr.mxu0 0.0
      %422 = vmatpush1.msra.mxu0 0.0
      %423 = vmatprep.subr.mxu0 0.0
      %424 = vmatpush1.msra.mxu0 0.0
      %425 = vmatprep.mubr.f32.mxu0 0.0
      %426 = vmatmul.mubr.f32.gmra.mrb[0].mxu0 %v359
      %v427 = vpop.f32.mrb[0].mxu0
      %v428 = vadd.f32 %v357, %v427
      %v429 = vpop.f32.mrb[0].mxu0
      %430 = vdwg.mxu0
      %v431 = vlaneseq
      %v432 = vshrl.u32 %v431, 7
      %v433 = vsub.s32 2, %v432
      %v434 = vrot.slane %v158, %v433
      %v436 = vsel %vm159, %v428, 0
      %438 = vmatprep.subr.mxu0 0.0
      %439 = vmatpush1.msra.mxu0 %v150
      %440 = vmatprep.subr.mxu0 0.0
      %441 = vmatpush1.msra.mxu0 %v151
      %442 = vmatprep.subr.mxu0 0.0
      %443 = vmatpush1.msra.mxu0 %v152
      %444 = vmatprep.subr.mxu0 0.0
      %445 = vmatpush1.msra.mxu0 %v153
      %446 = vmatprep.subr.mxu0 0.0
      %447 = vmatpush1.msra.mxu0 0.0
      %448 = vmatprep.subr.mxu0 0.0
      %449 = vmatpush1.msra.mxu0 0.0
      %450 = vmatprep.subr.mxu0 0.0
      %451 = vmatpush1.msra.mxu0 0.0
      %452 = vmatprep.subr.mxu0 0.0
      %453 = vmatpush1.msra.mxu0 0.0
      %454 = vmatprep.subr.mxu0 0.0
      %455 = vmatpush1.msra.mxu0 0.0
      %456 = vmatprep.subr.mxu0 0.0
      %457 = vmatpush1.msra.mxu0 0.0
      %458 = vmatprep.subr.mxu0 0.0
      %459 = vmatpush1.msra.mxu0 0.0
      %460 = vmatprep.subr.mxu0 0.0
      %461 = vmatpush1.msra.mxu0 0.0
      %462 = vmatprep.subr.mxu0 0.0
      %463 = vmatpush1.msra.mxu0 0.0
      %464 = vmatprep.subr.mxu0 0.0
      %465 = vmatpush1.msra.mxu0 0.0
      %466 = vmatprep.subr.mxu0 0.0
      %467 = vmatpush1.msra.mxu0 0.0
      %468 = vmatprep.subr.mxu0 0.0
      %469 = vmatpush1.msra.mxu0 0.0
      %470 = vmatprep.subr.mxu0 0.0
      %471 = vmatpush1.msra.mxu0 0.0
      %472 = vmatprep.subr.mxu0 0.0
      %473 = vmatpush1.msra.mxu0 0.0
      %474 = vmatprep.subr.mxu0 0.0
      %475 = vmatpush1.msra.mxu0 0.0
      %476 = vmatprep.subr.mxu0 0.0
      %477 = vmatpush1.msra.mxu0 0.0
      %478 = vmatprep.subr.mxu0 0.0
      %479 = vmatpush1.msra.mxu0 0.0
      %480 = vmatprep.subr.mxu0 0.0
      %481 = vmatpush1.msra.mxu0 0.0
      %482 = vmatprep.subr.mxu0 0.0
      %483 = vmatpush1.msra.mxu0 0.0
      %484 = vmatprep.subr.mxu0 0.0
      %485 = vmatpush1.msra.mxu0 0.0
      %486 = vmatprep.subr.mxu0 0.0
      %487 = vmatpush1.msra.mxu0 0.0
      %488 = vmatprep.subr.mxu0 0.0
      %489 = vmatpush1.msra.mxu0 0.0
      %490 = vmatprep.subr.mxu0 0.0
      %491 = vmatpush1.msra.mxu0 0.0
      %492 = vmatprep.subr.mxu0 0.0
      %493 = vmatpush1.msra.mxu0 0.0
      %494 = vmatprep.subr.mxu0 0.0
      %495 = vmatpush1.msra.mxu0 0.0
      %496 = vmatprep.subr.mxu0 0.0
      %497 = vmatpush1.msra.mxu0 0.0
      %498 = vmatprep.subr.mxu0 0.0
      %499 = vmatpush1.msra.mxu0 0.0
      %500 = vmatprep.subr.mxu0 0.0
      %501 = vmatpush1.msra.mxu0 0.0
      %502 = vmatprep.mubr.f32.mxu0 0.0
      %503 = vmatmul.mubr.f32.gmra.mrb[0].mxu0 %v436
      %v504 = vpop.f32.mrb[0].mxu0
      %v505 = vadd.f32 %v434, %v504
      %v506 = vpop.f32.mrb[0].mxu0
      %507 = vdwg.mxu0
      %v508 = vtanh.pop %v505
      %v509 = vlaneseq
      %v510 = vshrl.u32 %v509, 7
      %v511 = vsub.s32 0, %v510
      %v512 = vrot.slane %v158, %v511
      %v514 = vsel %vm159, %v508, 0
      %516 = vmatprep.subr.mxu0 0.0
      %517 = vmatpush1.msra.mxu0 %v154
      %518 = vmatprep.subr.mxu0 0.0
      %519 = vmatpush1.msra.mxu0 %v155
      %520 = vmatprep.subr.mxu0 0.0
      %521 = vmatpush1.msra.mxu0 %v156
      %522 = vmatprep.subr.mxu0 0.0
      %523 = vmatpush1.msra.mxu0 %v157
      %524 = vmatprep.subr.mxu0 0.0
      %525 = vmatpush1.msra.mxu0 0.0
      %526 = vmatprep.subr.mxu0 0.0
      %527 = vmatpush1.msra.mxu0 0.0
      %528 = vmatprep.subr.mxu0 0.0
      %529 = vmatpush1.msra.mxu0 0.0
      %530 = vmatprep.subr.mxu0 0.0
      %531 = vmatpush1.msra.mxu0 0.0
      %532 = vmatprep.subr.mxu0 0.0
      %533 = vmatpush1.msra.mxu0 0.0
      %534 = vmatprep.subr.mxu0 0.0
      %535 = vmatpush1.msra.mxu0 0.0
      %536 = vmatprep.subr.mxu0 0.0
      %537 = vmatpush1.msra.mxu0 0.0
      %538 = vmatprep.subr.mxu0 0.0
      %539 = vmatpush1.msra.mxu0 0.0
      %540 = vmatprep.subr.mxu0 0.0
      %541 = vmatpush1.msra.mxu0 0.0
      %542 = vmatprep.subr.mxu0 0.0
      %543 = vmatpush1.msra.mxu0 0.0
      %544 = vmatprep.subr.mxu0 0.0
      %545 = vmatpush1.msra.mxu0 0.0
      %546 = vmatprep.subr.mxu0 0.0
      %547 = vmatpush1.msra.mxu0 0.0
      %548 = vmatprep.subr.mxu0 0.0
      %549 = vmatpush1.msra.mxu0 0.0
      %550 = vmatprep.subr.mxu0 0.0
      %551 = vmatpush1.msra.mxu0 0.0
      %552 = vmatprep.subr.mxu0 0.0
      %553 = vmatpush1.msra.mxu0 0.0
      %554 = vmatprep.subr.mxu0 0.0
      %555 = vmatpush1.msra.mxu0 0.0
      %556 = vmatprep.subr.mxu0 0.0
      %557 = vmatpush1.msra.mxu0 0.0
      %558 = vmatprep.subr.mxu0 0.0
      %559 = vmatpush1.msra.mxu0 0.0
      %560 = vmatprep.subr.mxu0 0.0
      %561 = vmatpush1.msra.mxu0 0.0
      %562 = vmatprep.subr.mxu0 0.0
      %563 = vmatpush1.msra.mxu0 0.0
      %564 = vmatprep.subr.mxu0 0.0
      %565 = vmatpush1.msra.mxu0 0.0
      %566 = vmatprep.subr.mxu0 0.0
      %567 = vmatpush1.msra.mxu0 0.0
      %568 = vmatprep.subr.mxu0 0.0
      %569 = vmatpush1.msra.mxu0 0.0
      %570 = vmatprep.subr.mxu0 0.0
      %571 = vmatpush1.msra.mxu0 0.0
      %572 = vmatprep.subr.mxu0 0.0
      %573 = vmatpush1.msra.mxu0 0.0
      %574 = vmatprep.subr.mxu0 0.0
      %575 = vmatpush1.msra.mxu0 0.0
      %576 = vmatprep.subr.mxu0 0.0
      %577 = vmatpush1.msra.mxu0 0.0
      %578 = vmatprep.subr.mxu0 0.0
      %579 = vmatpush1.msra.mxu0 0.0
      %580 = vmatprep.mubr.f32.mxu0 0.0
      %581 = vmatmul.mubr.f32.gmra.mrb[0].mxu0 %v514
      %v582 = vpop.f32.mrb[0].mxu0
      %v583 = vadd.f32 %v512, %v582
      %v584 = vpop.f32.mrb[0].mxu0
      %585 = vdwg.mxu0
      %586 = vmax.xlane.f32.xlu0 %v583
      %v587 = vpop.xlane.xlu0 %586
      %v588 = vsub.f32 %v583, %v587
      %v589 = vmul.f32 %v588, 1.442695
      %v590 = vpow.pop %v589
      %591 = vadd.xlane.f32.xlu0 %v590
      %v592 = vpop.xlane.xlu0 %591
      %v593 = vrcp.pop %v592
      %v594 = vmul.f32 %v590, %v593
      %v595 = vmul.f32 %v594, %v144
      %596 = vadd.xlane.f32.xlu0 %v595
      %v597 = vpop.xlane.xlu0 %596
      %v598 = vrot.slane %v597, 4
      %v599 = vadd.f32 %v597, %v598
      %v600 = vrot.slane %v599, 2
      %v601 = vadd.f32 %v599, %v600
      %v602 = vrot.slane %v601, 1
      %v603 = vadd.f32 %v601, %v602
      %s604 = vtos %v603
      %s605 = smul.f32 %s604, 0.125
      %v606 = vstv %s605
      %607 = vst [vmem:[%s141] sm:$0x1] %v606
      %p608 = scmp.lt.s32.totalorder %s13, 3
      %s609 = scalar_select %p608, %s13, 3
      %s610 = scalar_lea.vmem %s2, %s609
      // Predicated region
      $region29: #{masked_lm_scores.1} parent=27 // pred_check
        %p611 = pneg %p78
      $region30: #{masked_lm_scores.1} parent=27 // pred_check_branch
        %613 = sbr.rel (%p611) target = $region32
      $region31: #{masked_lm_scores.1} parent=27 // pred_region
        _
      $region32: #{masked_lm_scores.1} parent=27 // pred_fallthru
        _
    $region28: #{masked_lm_scores.1} parent=5 // pred_fallthru
      _
    %p614 = scmp.le.s32.totalorder 2, %s8
    // Predicated region
    $region33: #{masked_lm_scores.1} parent=5 // pred_check
      %p615 = pneg %p614
    $region34: #{masked_lm_scores.1} parent=5 // pred_check_branch
      %617 = sbr.rel (%p615) target = $region36
    $region35: #{masked_lm_scores.1} parent=5 // pred_region
      %s618 = ssub.s32 %s8, 2
      // Predicated region
      $region37: #{masked_lm_scores.1} parent=35 // pred_check
        %p619 = pneg %p84
      $region38: #{masked_lm_scores.1} parent=35 // pred_check_branch
        %621 = sbr.rel (%p619) target = $region40
      $region39: #{masked_lm_scores.1} parent=35 // pred_region
        %p622 = scmp.lt.s32.totalorder %s14, 3
        %s623 = scalar_select %p622, %s14, 3
        %s624 = scalar_lea.vmem %s2, %s623
      $region40: #{masked_lm_scores.1} parent=35 // pred_fallthru
        _
    $region36: #{masked_lm_scores.1} parent=5 // pred_fallthru
      _
  $region6: #{masked_lm_scores.1} parent=0 // loop_footer
    %s12 = sadd.s32 1, %s8
  $region7: #{masked_lm_scores.1} parent=0 // loop_footer_branch
    %7 = sbr.rel target = $region3
  $region8: #{masked_lm_scores.1} parent=0 // loop_exit
    _

</llo_original>
